<compile_context>
chip_gen: v5e
topology: v5e:2x2
jax: 0.10.0
libtpu: 0.0.40
codegen_flags: <defaults>
</compile_context>

<pallas_src>
from functools import partial

import numpy as np
import jax
import jax.numpy as jnp
from jax.experimental import pallas as pl
from jax.experimental.pallas import tpu as pltpu


def _round8(n):
    return ((n + 7) // 8) * 8


# ----------------------------------------------------------------------------- kernel
def _gcn_fused_kernel(slab_ref, o_ref, *, plan):
    """All NodeUpdate blocks fused; one packed-slab input, one output store.

    plan["pieces"][name] = (row_off, rows_padded, rows, cols)      (static ints)
    plan["layers"][l]    = (mode, split)
        mode : 0 = identity, 1 = relu, 2 = concat(h, relu(h))
        split: this layer consumes the previous layer's concat output through split
               weights Wt{l}a / Wt{l}b, so the concat is never materialized.
    """

    def read(name):
        off, rpad, rows, cols = plan["pieces"][name]
        blk = slab_ref[off:off + rpad, :]          # aligned (8,128)-tile load
        return blk[:rows, :cols]                   # exact logical shape (static slice)

    h = read("h0")          # current single activation
    h_pair = None           # (z, relu(z)) carried when previous layer was a concat layer

    for l, (mode, split) in enumerate(plan["layers"]):
        a = read(f"A{l}")                          # dense mailbox-mean operator
        if split:
            # (A @ [z | r]) @ [Wa ; Wb]  ==  (A @ z) @ Wa + (A @ r) @ Wb
            z_prev, r_prev = h_pair
            agg_t = jnp.dot(a, z_prev, preferred_element_type=jnp.float32)
            agg_b = jnp.dot(a, r_prev, preferred_element_type=jnp.float32)
            z = (jnp.dot(agg_t, read(f"Wt{l}a"), preferred_element_type=jnp.float32)
                 + jnp.dot(agg_b, read(f"Wt{l}b"), preferred_element_type=jnp.float32)
                 + read(f"b{l}"))
        else:
            agg = jnp.dot(a, h, preferred_element_type=jnp.float32)   # neighbor mean
            z = jnp.dot(agg, read(f"Wt{l}"),
                        preferred_element_type=jnp.float32) + read(f"b{l}")

        if mode == 1:                              # relu
            h, h_pair = jnp.maximum(z, 0.0), None
        elif mode == 2:                            # concat(h, relu(h)) -> kept as a pair
            h, h_pair = None, (z, jnp.maximum(z, 0.0))
        else:                                      # identity
            h, h_pair = z, None

    if h is None:            # only if a concat layer is the final layer
        h = jnp.concatenate([h_pair[0], h_pair[1]], axis=-1)
    o_ref[...] = h           # single exact-shape store


def gcn_sampling_forward(slab, plan, out_shape):
    """Gridless fused forward: whole slab resident in VMEM, one kernel launch."""
    return pl.pallas_call(
        partial(_gcn_fused_kernel, plan=plan),
        out_shape=jax.ShapeDtypeStruct(out_shape, jnp.float32),
        in_specs=[pl.BlockSpec(memory_space=pltpu.MemorySpace.VMEM)],
        out_specs=pl.BlockSpec(memory_space=pltpu.MemorySpace.VMEM),
    )(slab)


# ----------------------------------------------------------------------------- packing
def build_plan_and_slab(features, agg_mats, params):
    """Pack all operands into one [rows,128] f32 slab (built ONCE at init) + static plan."""
    named = [("h0", features)]
    layers = []
    prev_mode = None
    for l, (A, (Wt, b, mode)) in enumerate(zip(agg_mats, params)):
        split = prev_mode == 2                     # previous layer produced concat(h, relu(h))
        named.append((f"A{l}", A))
        if split:
            half = Wt.shape[0] // 2
            named += [(f"Wt{l}a", Wt[:half]), (f"Wt{l}b", Wt[half:])]
        else:
            named.append((f"Wt{l}", Wt))
        named.append((f"b{l}", b))
        layers.append((mode, split))
        prev_mode = mode

    pieces, blocks, off = {}, [], 0
    for name, arr in named:
        arr = np.asarray(arr, np.float32)
        rows, cols = arr.shape
        assert cols <= 128, (name, arr.shape)
        rpad = _round8(rows)
        blk = np.zeros((rpad, 128), np.float32)    # lane-pad to 128, sublane-pad to 8
        blk[:rows, :cols] = arr
        blocks.append(blk)
        pieces[name] = (off, rpad, rows, cols)
        off += rpad
    slab = jnp.asarray(np.concatenate(blocks, axis=0))
    return slab, {"pieces": pieces, "layers": tuple(layers)}


# ----------------------------------------------------------------------------- glue
def make_agg_matrix(neigh_idx, n_src):
    """Dense mailbox-mean operator: A[j, :] = histogram(neigh_idx[j]) / fanout."""
    onehot = jax.nn.one_hot(neigh_idx, n_src, dtype=jnp.float32)  # [n_dst, fanout, n_src]
    return jnp.mean(onehot, axis=1)                               # [n_dst, n_src]


def init_linear(key, in_f, out_f):
    """nn.Linear-style init U(-1/sqrt(in), 1/sqrt(in)); W pre-transposed, b pre-reshaped."""
    kw, kb = jax.random.split(key)
    bound = 1.0 / (in_f ** 0.5)
    W = jax.random.uniform(kw, (out_f, in_f), jnp.float32, -bound, bound)
    b = jax.random.uniform(kb, (out_f,), jnp.float32, -bound, bound)
    return W.T, b.reshape(1, out_f)               # [in_f, out_f], [1, out_f]


def reference_forward(features, agg_mats, params):
    """Plain-JAX reference with the original (un-split, explicit-concat) semantics."""
    h = features
    for A, (Wt, b, mode) in zip(agg_mats, params):
        agg = jnp.dot(A, h)
        z = jnp.dot(agg, Wt) + b
        if mode == 1:
            h = jnp.maximum(z, 0.0)
        elif mode == 2:
            h = jnp.concatenate([z, jnp.maximum(z, 0.0)], axis=-1)
        else:
            h = z
    return h


# ----------------------------------------------------------------------------- main
if __name__ == "__main__":
    # TODO(synk): dropout constructed with p=0.0 (self.dropout is None) -> identity;
    # non-zero dropout would need pltpu PRNG masking. NodeUpdate.test=False so no norm.
    in_feats, n_hidden, n_classes, n_layers = 16, 32, 8, 2
    layer_nodes = [32, 16, 8, 4]   # NodeFlow layer sizes (n_layers + 2 layers)
    fanout = 3

    key = jax.random.PRNGKey(0)
    k_feat, k_graph, k_par = jax.random.split(key, 3)

    # node features for nf layer 0
    features = jax.random.normal(k_feat, (layer_nodes[0], in_feats), jnp.float32)

    # sampled neighbor indices per block -> dense mean-aggregation matrices
    agg_mats = []
    gkeys = jax.random.split(k_graph, len(layer_nodes) - 1)
    for i in range(len(layer_nodes) - 1):
        n_src, n_dst = layer_nodes[i], layer_nodes[i + 1]
        neigh_idx = jax.random.randint(gkeys[i], (n_dst, fanout), 0, n_src)
        agg_mats.append(make_agg_matrix(neigh_idx, n_src))

    # NodeUpdate parameters: (Wt, b, mode)  mode: 0=none, 1=relu, 2=concat(h, relu(h))
    pkeys = jax.random.split(k_par, n_layers + 1)
    params = []
    params.append(init_linear(pkeys[0], in_feats, n_hidden) + ((2 if n_layers == 1 else 1),))
    for i in range(1, n_layers):
        mode = 2 if i == n_layers - 1 else 1
        params.append(init_linear(pkeys[i], n_hidden, n_hidden) + (mode,))
    params.append(init_linear(pkeys[n_layers], 2 * n_hidden, n_classes) + (0,))

    # pack everything into one slab + static plan (done once, at init)
    slab, plan = build_plan_and_slab(features, agg_mats, params)

    last_mode = params[-1][2]
    out_f = params[-1][0].shape[1]
    out_w = 2 * out_f if last_mode == 2 else out_f
    out_shape = (layer_nodes[-1], out_w)

    out = gcn_sampling_forward(slab, plan, out_shape)
    out = jax.block_until_ready(out)
    assert out.shape == (layer_nodes[-1], n_classes), out.shape

    # sanity-check against the un-fused, explicit-concat reference (loose tolerance:
    # default MXU precision for f32 dots differs slightly from the XLA reference path)
    ref = reference_forward(features, agg_mats, params)
    err = float(jnp.max(jnp.abs(out - ref)))
    assert err < 5e-2, f"max |out - ref| = {err}"

    print("KERNEL_OK")
</pallas_src>

<mosaic_0001>
module attributes {stable_mosaic.version = 11 : i64} {
  func.func @_gcn_fused_kernel(%arg0: memref<200x128xf32, #tpu.memory_space<vmem>>, %arg1: memref<4x8xf32, #tpu.memory_space<vmem>>) attributes {dimension_semantics = [], scalar_prefetch = 0 : i64, scratch_operands = 0 : i64, tpu.core_type = #tpu.core_type<tc>} {
    %c0 = arith.constant 0 : index
    %c0_0 = arith.constant 0 : index
    %0 = vector.load %arg0[%c0, %c0_0] : memref<200x128xf32, #tpu.memory_space<vmem>>, vector<32x128xf32>
    %1 = vector.extract_strided_slice %0 {offsets = [0, 0], sizes = [32, 16], strides = [1, 1]} : vector<32x128xf32> to vector<32x16xf32>
    %c32 = arith.constant 32 : index
    %c0_1 = arith.constant 0 : index
    %2 = vector.load %arg0[%c32, %c0_1] : memref<200x128xf32, #tpu.memory_space<vmem>>, vector<16x128xf32>
    %3 = vector.extract_strided_slice %2 {offsets = [0, 0], sizes = [16, 32], strides = [1, 1]} : vector<16x128xf32> to vector<16x32xf32>
    %cst = arith.constant dense<0.000000e+00> : vector<16x16xf32>
    %4 = tpu.matmul %3, %1, %cst {dimension_numbers = #tpu.dot_dimension_numbers<[1], [0], [0], [1], [0, 0, 1, 1], [], []>} : vector<16x32xf32>, vector<32x16xf32>, vector<16x16xf32> -> vector<16x16xf32>
    %c48 = arith.constant 48 : index
    %c0_2 = arith.constant 0 : index
    %5 = vector.load %arg0[%c48, %c0_2] : memref<200x128xf32, #tpu.memory_space<vmem>>, vector<16x128xf32>
    %6 = vector.extract_strided_slice %5 {offsets = [0, 0], sizes = [16, 32], strides = [1, 1]} : vector<16x128xf32> to vector<16x32xf32>
    %cst_3 = arith.constant dense<0.000000e+00> : vector<16x32xf32>
    %7 = tpu.matmul %4, %6, %cst_3 {dimension_numbers = #tpu.dot_dimension_numbers<[1], [0], [0], [1], [0, 0, 1, 1], [], []>} : vector<16x16xf32>, vector<16x32xf32>, vector<16x32xf32> -> vector<16x32xf32>
    %c64 = arith.constant 64 : index
    %c0_4 = arith.constant 0 : index
    %8 = vector.load %arg0[%c64, %c0_4] : memref<200x128xf32, #tpu.memory_space<vmem>>, vector<8x128xf32>
    %9 = vector.extract_strided_slice %8 {offsets = [0, 0], sizes = [1, 32], strides = [1, 1]} : vector<8x128xf32> to vector<1x32xf32>
    %10 = vector.broadcast %9 : vector<1x32xf32> to vector<16x32xf32>
    %11 = arith.addf %7, %10 : vector<16x32xf32>
    %cst_5 = arith.constant 0.000000e+00 : f32
    %12 = vector.broadcast %cst_5 : f32 to vector<16x32xf32>
    %13 = arith.maximumf %11, %12 : vector<16x32xf32>
    %c72 = arith.constant 72 : index
    %c0_6 = arith.constant 0 : index
    %14 = vector.load %arg0[%c72, %c0_6] : memref<200x128xf32, #tpu.memory_space<vmem>>, vector<8x128xf32>
    %15 = vector.extract_strided_slice %14 {offsets = [0, 0], sizes = [8, 16], strides = [1, 1]} : vector<8x128xf32> to vector<8x16xf32>
    %cst_7 = arith.constant dense<0.000000e+00> : vector<8x32xf32>
    %16 = tpu.matmul %15, %13, %cst_7 {dimension_numbers = #tpu.dot_dimension_numbers<[1], [0], [0], [1], [0, 0, 1, 1], [], []>} : vector<8x16xf32>, vector<16x32xf32>, vector<8x32xf32> -> vector<8x32xf32>
    %c80 = arith.constant 80 : index
    %c0_8 = arith.constant 0 : index
    %17 = vector.load %arg0[%c80, %c0_8] : memref<200x128xf32, #tpu.memory_space<vmem>>, vector<32x128xf32>
    %18 = vector.extract_strided_slice %17 {offsets = [0, 0], sizes = [32, 32], strides = [1, 1]} : vector<32x128xf32> to vector<32x32xf32>
    %cst_9 = arith.constant dense<0.000000e+00> : vector<8x32xf32>
    %19 = tpu.matmul %16, %18, %cst_9 {dimension_numbers = #tpu.dot_dimension_numbers<[1], [0], [0], [1], [0, 0, 1, 1], [], []>} : vector<8x32xf32>, vector<32x32xf32>, vector<8x32xf32> -> vector<8x32xf32>
    %c112 = arith.constant 112 : index
    %c0_10 = arith.constant 0 : index
    %20 = vector.load %arg0[%c112, %c0_10] : memref<200x128xf32, #tpu.memory_space<vmem>>, vector<8x128xf32>
    %21 = vector.extract_strided_slice %20 {offsets = [0, 0], sizes = [1, 32], strides = [1, 1]} : vector<8x128xf32> to vector<1x32xf32>
    %22 = vector.broadcast %21 : vector<1x32xf32> to vector<8x32xf32>
    %23 = arith.addf %19, %22 : vector<8x32xf32>
    %cst_11 = arith.constant 0.000000e+00 : f32
    %24 = vector.broadcast %cst_11 : f32 to vector<8x32xf32>
    %25 = arith.maximumf %23, %24 : vector<8x32xf32>
    %c120 = arith.constant 120 : index
    %c0_12 = arith.constant 0 : index
    %26 = vector.load %arg0[%c120, %c0_12] : memref<200x128xf32, #tpu.memory_space<vmem>>, vector<8x128xf32>
    %27 = vector.extract_strided_slice %26 {offsets = [0, 0], sizes = [4, 8], strides = [1, 1]} : vector<8x128xf32> to vector<4x8xf32>
    %cst_13 = arith.constant dense<0.000000e+00> : vector<4x32xf32>
    %28 = tpu.matmul %27, %23, %cst_13 {dimension_numbers = #tpu.dot_dimension_numbers<[1], [0], [0], [1], [0, 0, 1, 1], [], []>} : vector<4x8xf32>, vector<8x32xf32>, vector<4x32xf32> -> vector<4x32xf32>
    %cst_14 = arith.constant dense<0.000000e+00> : vector<4x32xf32>
    %29 = tpu.matmul %27, %25, %cst_14 {dimension_numbers = #tpu.dot_dimension_numbers<[1], [0], [0], [1], [0, 0, 1, 1], [], []>} : vector<4x8xf32>, vector<8x32xf32>, vector<4x32xf32> -> vector<4x32xf32>
    %c128 = arith.constant 128 : index
    %c0_15 = arith.constant 0 : index
    %30 = vector.load %arg0[%c128, %c0_15] : memref<200x128xf32, #tpu.memory_space<vmem>>, vector<32x128xf32>
    %31 = vector.extract_strided_slice %30 {offsets = [0, 0], sizes = [32, 8], strides = [1, 1]} : vector<32x128xf32> to vector<32x8xf32>
    %cst_16 = arith.constant dense<0.000000e+00> : vector<4x8xf32>
    %32 = tpu.matmul %28, %31, %cst_16 {dimension_numbers = #tpu.dot_dimension_numbers<[1], [0], [0], [1], [0, 0, 1, 1], [], []>} : vector<4x32xf32>, vector<32x8xf32>, vector<4x8xf32> -> vector<4x8xf32>
    %c160 = arith.constant 160 : index
    %c0_17 = arith.constant 0 : index
    %33 = vector.load %arg0[%c160, %c0_17] : memref<200x128xf32, #tpu.memory_space<vmem>>, vector<32x128xf32>
    %34 = vector.extract_strided_slice %33 {offsets = [0, 0], sizes = [32, 8], strides = [1, 1]} : vector<32x128xf32> to vector<32x8xf32>
    %cst_18 = arith.constant dense<0.000000e+00> : vector<4x8xf32>
    %35 = tpu.matmul %29, %34, %cst_18 {dimension_numbers = #tpu.dot_dimension_numbers<[1], [0], [0], [1], [0, 0, 1, 1], [], []>} : vector<4x32xf32>, vector<32x8xf32>, vector<4x8xf32> -> vector<4x8xf32>
    %36 = arith.addf %32, %35 : vector<4x8xf32>
    %c192 = arith.constant 192 : index
    %c0_19 = arith.constant 0 : index
    %37 = vector.load %arg0[%c192, %c0_19] : memref<200x128xf32, #tpu.memory_space<vmem>>, vector<8x128xf32>
    %38 = vector.extract_strided_slice %37 {offsets = [0, 0], sizes = [1, 8], strides = [1, 1]} : vector<8x128xf32> to vector<1x8xf32>
    %39 = vector.broadcast %38 : vector<1x8xf32> to vector<4x8xf32>
    %40 = arith.addf %36, %39 : vector<4x8xf32>
    %c0_20 = arith.constant 0 : index
    %c0_21 = arith.constant 0 : index
    %41 = vector.load %arg1[%c0_20, %c0_21] : memref<4x8xf32, #tpu.memory_space<vmem>>, vector<4x8xf32>
    tpu.vector_store %arg1[%c0_20, %c0_21], %40 {strides = array<i32>} : memref<4x8xf32, #tpu.memory_space<vmem>>, vector<4x8xf32>,
    return
  }
}

</mosaic_0001>

<llo_original>
// kernel: tpu_custom_call.1
$region0: #{tpu_custom_call.1}
  #allocation0 [shape = 'u32[]', space=smem, size = 0x4, offset = 0x4, fixed_abs, tag = 'smem constant byte address 0x4 - core index']
  #allocation1 [shape = 'u32[72,128]{1,0:T(1,128)}', space=vmem, size = 0x9000, scoped, tag = 'internal scratch']
  %s0 = inlined_call_operand.hbm [shape: f32[200,128], index: 0, kind: input, shape index: {}]
  %s1 = inlined_call_operand.hbm [shape: f32[4,8], index: 1, kind: output, shape index: {}]
  %s2 = sld [smem:[#allocation0]]
  $region18: #{tpu_custom_call.1} parent=0
    _
  %s4 = ssub.s32 1, %s2
  %s5 = scalar_select 0, %s4, %s2
  $region1: #{tpu_custom_call.1} parent=0
    #allocation2 [shape = 'u8[102400]{0}', space=vmem, size = 0x19000, scoped, tag = 'input window, operand 0, single buffered']
    #allocation3 [shape = 's32[1]{0}', space=sflag, size = 0x4, scoped, tag = 'scoped memory for tpu_custom_call.1']
    #allocation4 [shape = 's32[1]{0}', space=sflag, size = 0x4, scoped, tag = 'scoped memory for tpu_custom_call.1']
    #allocation5 [shape = 'u8[2048]{0}', space=vmem, size = 0x800, scoped, tag = 'output window, operand 0, single buffered']
    %6 = vsyncpa [#allocation3], 0
    %7 = vsyncpa [#allocation4], 0
    // Predicated region
    $region2: #{tpu_custom_call.1} parent=1 // pred_check
      _
    $region3: #{tpu_custom_call.1} parent=1 // pred_check_branch
      %9 = sbr.rel (0) target = $region5
    $region4: #{tpu_custom_call.1} parent=1 // pred_region
      %11 = vsyncadd [#allocation3], 0
      %s12 = sshll.u32 %s0, 4
      %s13 = int_to_ptr.hbm [resolvable:$true] %s12
      %s14 = sshll.u32 [#allocation2], 4
      %s15 = int_to_ptr.vmem [resolvable:$true] %s14
      %20 = dma.hbm_to_vmem [thread:$0]  %s13, 3200, %s15, [#allocation3], 128, 128, 8
    $region5: #{tpu_custom_call.1} parent=1 // pred_fallthru
      _
    // Predicated region
    $region6: #{tpu_custom_call.1} parent=1 // pred_check
      _
    $region7: #{tpu_custom_call.1} parent=1 // pred_check_branch
      %22 = sbr.rel (0) target = $region9
    $region8: #{tpu_custom_call.1} parent=1 // pred_region
      %24 = dma.done [#allocation3], 3200
    $region9: #{tpu_custom_call.1} parent=1 // pred_fallthru
      _
    %v25 = vld [vmem:[#allocation2] sm:$0xff]
    %v26 = vld [vmem:[#allocation2 + $0x8] sm:$0xff]
    %v27 = vld [vmem:[#allocation2 + $0x10] sm:$0xff]
    %v28 = vld [vmem:[#allocation2 + $0x18] sm:$0xff]
    %v29 = vld [vmem:[#allocation2 + $0x20] sm:$0xff]
    %v30 = vld [vmem:[#allocation2 + $0x28] sm:$0xff]
    %vm31 = vcmask 261120
    %v33 = vsel %vm31, %v29, 0
    %v36 = vsel %vm31, %v30, 0
    %38 = vmatpush.msra.mxu0 0.0
    %39 = vmatpush.msra.mxu0 0.0
    %40 = vmatpush.msra.mxu0 0.0
    %41 = vmatpush.msra.mxu0 0.0
    %42 = vmatpush.msra.mxu0 0.0
    %43 = vmatpush.msra.mxu0 0.0
    %44 = vmatpush.msra.mxu0 0.0
    %45 = vmatpush.msra.mxu0 0.0
    %46 = vmatpush.msra.mxu0 0.0
    %47 = vmatpush.msra.mxu0 0.0
    %48 = vmatpush.msra.mxu0 0.0
    %49 = vmatpush.msra.mxu0 0.0
    %50 = vmatpush.msra.mxu0 %v28
    %51 = vmatpush.msra.mxu0 %v27
    %52 = vmatpush.msra.mxu0 %v26
    %53 = vmatpush.msra.mxu0 %v25
    %54 = vmatmul.f32.gmra.mxu0 %v33
    %v55 = vpop.f32.mrf.mxu0
    %v56 = vadd.f32 0.0, %v55
    %57 = vmatmul.f32.gmra.mxu0 %v36
    %v58 = vpop.f32.mrf.mxu0
    %v59 = vadd.f32 0.0, %v58
    %60 = vdwg.mxu0
    %v61 = vld [vmem:[#allocation2 + $0x30] sm:$0xff]
    %v62 = vld [vmem:[#allocation2 + $0x38] sm:$0xff]
    %v63 = vld [vmem:[#allocation2 + $0x40] sm:$0xff]
    %v64 = vperm.slane %v63, 0
    %vm65 = vcmask 130048
    %v67 = vsel %vm65, %v56, 0
    %v70 = vsel %vm65, %v59, 0
    %72 = vmatpush.msra.mxu0 0.0
    %73 = vmatpush.msra.mxu0 0.0
    %74 = vmatpush.msra.mxu0 0.0
    %75 = vmatpush.msra.mxu0 0.0
    %76 = vmatpush.msra.mxu0 0.0
    %77 = vmatpush.msra.mxu0 0.0
    %78 = vmatpush.msra.mxu0 0.0
    %79 = vmatpush.msra.mxu0 0.0
    %80 = vmatpush.msra.mxu0 0.0
    %81 = vmatpush.msra.mxu0 0.0
    %82 = vmatpush.msra.mxu0 0.0
    %83 = vmatpush.msra.mxu0 0.0
    %84 = vmatpush.msra.mxu0 0.0
    %85 = vmatpush.msra.mxu0 0.0
    %86 = vmatpush.msra.mxu0 %v62
    %87 = vmatpush.msra.mxu0 %v61
    %88 = vmatmul.f32.gmra.mxu0 %v67
    %v89 = vpop.f32.mrf.mxu0
    %v90 = vadd.f32 %v64, %v89
    %91 = vmatmul.f32.gmra.mxu0 %v70
    %v92 = vpop.f32.mrf.mxu0
    %v93 = vadd.f32 %v64, %v92
    %94 = vdwg.mxu0
    %v95 = vmax.f32 %v90, 0.0
    %v96 = vmax.f32 %v93, 0.0
    %v97 = vld [vmem:[#allocation2 + $0x48] sm:$0xff]
    %v99 = vsel %vm65, %v97, 0
    %101 = vmatpush.msra.mxu0 0.0
    %102 = vmatpush.msra.mxu0 0.0
    %103 = vmatpush.msra.mxu0 0.0
    %104 = vmatpush.msra.mxu0 0.0
    %105 = vmatpush.msra.mxu0 0.0
    %106 = vmatpush.msra.mxu0 0.0
    %107 = vmatpush.msra.mxu0 0.0
    %108 = vmatpush.msra.mxu0 0.0
    %109 = vmatpush.msra.mxu0 0.0
    %110 = vmatpush.msra.mxu0 0.0
    %111 = vmatpush.msra.mxu0 0.0
    %112 = vmatpush.msra.mxu0 0.0
    %113 = vmatpush.msra.mxu0 0.0
    %114 = vmatpush.msra.mxu0 0.0
    %115 = vmatpush.msra.mxu0 %v96
    %116 = vmatpush.msra.mxu0 %v95
    %117 = vmatmul.f32.gmra.mxu0 %v99
    %v118 = vpop.f32.mrf.mxu0
    %v119 = vadd.f32 0.0, %v118
    %120 = vdwg.mxu0
    %v121 = vld [vmem:[#allocation2 + $0x50] sm:$0xff]
    %v122 = vld [vmem:[#allocation2 + $0x58] sm:$0xff]
    %v123 = vld [vmem:[#allocation2 + $0x60] sm:$0xff]
    %v124 = vld [vmem:[#allocation2 + $0x68] sm:$0xff]
    %v125 = vld [vmem:[#allocation2 + $0x70] sm:$0xff]
    %v126 = vperm.slane %v125, 0
    %v128 = vsel %vm31, %v119, 0
    %130 = vmatpush.msra.mxu0 0.0
    %131 = vmatpush.msra.mxu0 0.0
    %132 = vmatpush.msra.mxu0 0.0
    %133 = vmatpush.msra.mxu0 0.0
    %134 = vmatpush.msra.mxu0 0.0
    %135 = vmatpush.msra.mxu0 0.0
    %136 = vmatpush.msra.mxu0 0.0
    %137 = vmatpush.msra.mxu0 0.0
    %138 = vmatpush.msra.mxu0 0.0
    %139 = vmatpush.msra.mxu0 0.0
    %140 = vmatpush.msra.mxu0 0.0
    %141 = vmatpush.msra.mxu0 0.0
    %142 = vmatpush.msra.mxu0 %v124
    %143 = vmatpush.msra.mxu0 %v123
    %144 = vmatpush.msra.mxu0 %v122
    %145 = vmatpush.msra.mxu0 %v121
    %146 = vmatmul.f32.gmra.mxu0 %v128
    %v147 = vpop.f32.mrf.mxu0
    %v148 = vadd.f32 %v126, %v147
    %149 = vdwg.mxu0
    %v150 = vmax.f32 %v148, 0.0
    %v151 = vld [vmem:[#allocation2 + $0x78] sm:$0xff]
    %vm152 = vcmask 64512
    %v154 = vsel %vm152, %v151, 0
    %156 = vmatpush.msra.mxu0 0.0
    %157 = vmatpush.msra.mxu0 0.0
    %158 = vmatpush.msra.mxu0 0.0
    %159 = vmatpush.msra.mxu0 0.0
    %160 = vmatpush.msra.mxu0 0.0
    %161 = vmatpush.msra.mxu0 0.0
    %162 = vmatpush.msra.mxu0 0.0
    %163 = vmatpush.msra.mxu0 0.0
    %164 = vmatpush.msra.mxu0 0.0
    %165 = vmatpush.msra.mxu0 0.0
    %166 = vmatpush.msra.mxu0 0.0
    %167 = vmatpush.msra.mxu0 0.0
    %168 = vmatpush.msra.mxu0 0.0
    %169 = vmatpush.msra.mxu0 0.0
    %170 = vmatpush.msra.mxu0 0.0
    %171 = vmatpush.msra.mxu0 %v148
    %172 = vmatmul.f32.gmra.mxu0 %v154
    %v173 = vpop.f32.mrf.mxu0
    %v174 = vadd.f32 0.0, %v173
    %175 = vdwg.mxu0
    %176 = vmatpush.msra.mxu0 0.0
    %177 = vmatpush.msra.mxu0 0.0
    %178 = vmatpush.msra.mxu0 0.0
    %179 = vmatpush.msra.mxu0 0.0
    %180 = vmatpush.msra.mxu0 0.0
    %181 = vmatpush.msra.mxu0 0.0
    %182 = vmatpush.msra.mxu0 0.0
    %183 = vmatpush.msra.mxu0 0.0
    %184 = vmatpush.msra.mxu0 0.0
    %185 = vmatpush.msra.mxu0 0.0
    %186 = vmatpush.msra.mxu0 0.0
    %187 = vmatpush.msra.mxu0 0.0
    %188 = vmatpush.msra.mxu0 0.0
    %189 = vmatpush.msra.mxu0 0.0
    %190 = vmatpush.msra.mxu0 0.0
    %191 = vmatpush.msra.mxu0 %v150
    %192 = vmatmul.f32.gmra.mxu0 %v154
    %v193 = vpop.f32.mrf.mxu0
    %v194 = vadd.f32 0.0, %v193
    %195 = vdwg.mxu0
    %v196 = vld [vmem:[#allocation2 + $0x80] sm:$0xff]
    %v197 = vld [vmem:[#allocation2 + $0x88] sm:$0xff]
    %v198 = vld [vmem:[#allocation2 + $0x90] sm:$0xff]
    %v199 = vld [vmem:[#allocation2 + $0x98] sm:$0xff]
    %v200 = vld [vmem:[#allocation2 + $0xa0] sm:$0xff]
    %v201 = vld [vmem:[#allocation2 + $0xa8] sm:$0xff]
    %v202 = vld [vmem:[#allocation2 + $0xb0] sm:$0xff]
    %v203 = vld [vmem:[#allocation2 + $0xb8] sm:$0xff]
    %v205 = vsel %vm31, %v194, 0
    %207 = vmatpush.msra.mxu0 0.0
    %208 = vmatpush.msra.mxu0 0.0
    %209 = vmatpush.msra.mxu0 0.0
    %210 = vmatpush.msra.mxu0 0.0
    %211 = vmatpush.msra.mxu0 0.0
    %212 = vmatpush.msra.mxu0 0.0
    %213 = vmatpush.msra.mxu0 0.0
    %214 = vmatpush.msra.mxu0 0.0
    %215 = vmatpush.msra.mxu0 0.0
    %216 = vmatpush.msra.mxu0 0.0
    %217 = vmatpush.msra.mxu0 0.0
    %218 = vmatpush.msra.mxu0 0.0
    %219 = vmatpush.msra.mxu0 %v203
    %220 = vmatpush.msra.mxu0 %v202
    %221 = vmatpush.msra.mxu0 %v201
    %222 = vmatpush.msra.mxu0 %v200
    %223 = vmatmul.f32.gmra.mxu0 %v205
    %v224 = vpop.f32.mrf.mxu0
    %v225 = vadd.f32 0.0, %v224
    %226 = vdwg.mxu0
    %v228 = vsel %vm31, %v174, 0
    %230 = vmatpush.msra.mxu0 0.0
    %231 = vmatpush.msra.mxu0 0.0
    %232 = vmatpush.msra.mxu0 0.0
    %233 = vmatpush.msra.mxu0 0.0
    %234 = vmatpush.msra.mxu0 0.0
    %235 = vmatpush.msra.mxu0 0.0
    %236 = vmatpush.msra.mxu0 0.0
    %237 = vmatpush.msra.mxu0 0.0
    %238 = vmatpush.msra.mxu0 0.0
    %239 = vmatpush.msra.mxu0 0.0
    %240 = vmatpush.msra.mxu0 0.0
    %241 = vmatpush.msra.mxu0 0.0
    %242 = vmatpush.msra.mxu0 %v199
    %243 = vmatpush.msra.mxu0 %v198
    %244 = vmatpush.msra.mxu0 %v197
    %245 = vmatpush.msra.mxu0 %v196
    %246 = vmatmul.f32.gmra.mxu0 %v228
    %v247 = vpop.f32.mrf.mxu0
    %v248 = vadd.f32 %v225, %v247
    %249 = vdwg.mxu0
    %v250 = vld [vmem:[#allocation2 + $0xc0] sm:$0xff]
    %v251 = vperm.slane %v250, 0
    %v252 = vadd.f32 %v248, %v251
    %vm253 = vcmask 60416
    %254 = vst.msk [vmem:[#allocation5] sm:$0xf] %vm253, %v252
    // Predicated region
    $region10: #{tpu_custom_call.1} parent=1 // pred_check
      _
    $region11: #{tpu_custom_call.1} parent=1 // pred_check_branch
      %256 = sbr.rel (0) target = $region13
    $region12: #{tpu_custom_call.1} parent=1 // pred_region
      %258 = vsyncadd [#allocation4], 0
      %s260 = sshll.u32 [#allocation5], 4
      %s261 = int_to_ptr.vmem [resolvable:$true] %s260
      %s262 = sshll.u32 %s1, 4
      %s263 = int_to_ptr.hbm [resolvable:$true] %s262
      %265 = dma.vmem_to_hbm [thread:$0]  %s261, 64, %s263, [#allocation4]
    $region13: #{tpu_custom_call.1} parent=1 // pred_fallthru
      _
    // Predicated region
    $region14: #{tpu_custom_call.1} parent=1 // pred_check
      _
    $region15: #{tpu_custom_call.1} parent=1 // pred_check_branch
      %267 = sbr.rel (0) target = $region17
    $region16: #{tpu_custom_call.1} parent=1 // pred_region
      %269 = dma.done [#allocation4], 64
    $region17: #{tpu_custom_call.1} parent=1 // pred_fallthru
      _
    %270 = vsyncpa [#allocation3], 1
    %271 = vsyncpa [#allocation4], 1

</llo_original>
